<compile_context>
chip_gen: v7x
topology: tpu7x:2x2x1
jax: 0.10.0
libtpu: 0.0.40
codegen_flags: <defaults>
</compile_context>

<pallas_src>
import functools

import numpy as np
import jax
import jax.numpy as jnp
from jax.experimental import pallas as pl
from jax.experimental.pallas import tpu as pltpu


def _round_up(v, m):
    return (v + m - 1) // m * m


def _hann_periodic(n_fft):
    # torch.hann_window(n_fft) default (periodic=True)
    n = np.arange(n_fft, dtype=np.float64)
    return 0.5 - 0.5 * np.cos(2.0 * np.pi * n / n_fft)


def _gain_vector(n_fft, hop, n_frames):
    """g[t] such that envelope[t] = |x[t]| * g[t]; float64, length (n_frames-1)*hop."""
    win2 = _hann_periodic(n_fft) ** 2
    cutoff = n_fft // 2 + 1
    trim = n_fft // 2
    out_t = (n_frames - 1) * hop
    l_full = n_fft + (n_frames - 1) * hop
    env_all = np.zeros((l_full,), np.float64)
    env_kept = np.zeros((l_full,), np.float64)
    for f in range(n_frames):
        env_all[f * hop:f * hop + n_fft] += win2
        if f < cutoff:
            env_kept[f * hop:f * hop + n_fft] += win2
    seg_all = env_all[trim:trim + out_t]
    if seg_all.min() < 1e-11:
        # Replicates torch.istft's NOLA (nonzero overlap-add) check.
        raise ValueError("istft NOLA check failed: window overlap-add envelope has zeros")
    return env_kept[trim:trim + out_t] / seg_all


def _env_kernel(x_ref, g_ref, o_ref, *, k):
    """envelope = |x| * gain, with an optional fused k-tap moving average (avg_pool1d).

    x block: (rb, L_in) f32, gain block: (1, L_in) f32 (sublane-broadcast),
    out block: (rb, L_out).  For k == 1, L_out == L_in and this is pure VPU
    elementwise work; for k > 1 the zero-padding of the envelope is carried by
    zero-padded x / gain columns so the pooling is k static shifted adds.
    """
    env = jnp.abs(x_ref[...]) * g_ref[...]
    if k == 1:
        o_ref[...] = env
    else:
        l_out = o_ref.shape[-1]
        acc = env[:, 0:l_out]
        for j in range(1, k):                    # static unroll; lane shifts go to XLU
            acc = acc + env[:, j:j + l_out]
        o_ref[...] = acc * np.float32(1.0 / k)


def _row_tile_candidates(rp, cap=64):
    """Multiple-of-8 divisors of rp (rp is a multiple of 8), largest first, <= cap."""
    return [d for d in range(min(rp, cap), 7, -8) if rp % d == 0]


def _time_tile(w, cap=4096):
    """Largest multiple-of-128 divisor of w (w is a multiple of 128) that is <= cap."""
    m = w // 128
    best = 1
    d = 1
    while d * 128 <= min(w, cap):
        if m % d == 0:
            best = d
        d += 1
    return best * 128


def _compiler_params(block_bytes, parallel_dims):
    # Derive the VMEM request from the actual (double-buffered) block footprint plus
    # headroom instead of hardcoding a full TensorCore's worth (v7x only has 64 MiB/TC).
    limit = int(min(max(2 * block_bytes + (4 << 20), 16 << 20), 48 << 20))
    return pltpu.CompilerParams(dimension_semantics=parallel_dims,
                                vmem_limit_bytes=limit)


@functools.partial(jax.jit, static_argnums=(1, 2, 3))
def _envelope_following(x, n_fft, hop, smoothing_factor):
    x = jnp.asarray(x, jnp.float32)
    B, C, T = x.shape
    R = B * C
    trim = n_fft // 2
    cutoff = n_fft // 2 + 1
    if trim >= T:
        raise ValueError("time dimension must exceed n_fft // 2 (torch reflect padding)")
    n_frames = (T + 2 * trim - n_fft) // hop + 1     # torch.stft frame count (center=True)
    out_t = (n_frames - 1) * hop                     # torch.istft output length (length=None)
    if out_t <= 0:
        raise ValueError("signal too short for the given hop_length")

    g_np = _gain_vector(n_fft, hop, n_frames)        # float64 host precompute, (out_t,)
    k = 1 if smoothing_factor is None else int(smoothing_factor)

    xr = x.reshape(R, T)
    rp = _round_up(R, 8)

    if k <= 1:
        # ------------- single elementwise HBM-bound pass:  out = |x| * g -------------
        # Skip the exactly-zero tail (g[t] == 0 once every frame overlapping t has been
        # masked) when it is a clear HBM-traffic win; otherwise keep the full width so
        # the aligned common case reads x in place with no wrapper-side copy.
        t_nz = min(out_t, (cutoff - 1) * hop + (n_fft - trim))
        w = _round_up(t_nz, 128) if out_t >= 2 * t_nz else _round_up(T, 128)

        if w <= T:
            x_in = xr if w == T else xr[:, :w]
        else:
            x_in = jnp.pad(xr, ((0, 0), (0, w - T)))
        if rp != R:
            x_in = jnp.pad(x_in, ((0, rp - R), (0, 0)))

        g_full = np.zeros((1, w), np.float32)        # columns >= out_t get gain 0
        n_copy = min(out_t, w)
        g_full[0, :n_copy] = g_np[:n_copy].astype(np.float32)
        g = jnp.asarray(g_full)

        rb = _row_tile_candidates(rp)[0]
        tt = _time_tile(w)                           # lane-dense (>=128) output tiles
        grid = (rp // rb, w // tt)
        block_bytes = 4 * (2 * rb * tt + tt)         # x + out + gain blocks (f32)

        out = pl.pallas_call(
            functools.partial(_env_kernel, k=1),
            out_shape=jax.ShapeDtypeStruct((rp, w), jnp.float32),
            grid=grid,
            in_specs=[
                pl.BlockSpec((rb, tt), lambda i, j: (i, j)),   # signal tile
                pl.BlockSpec((1, tt), lambda i, j: (0, j)),    # gain row (broadcast)
            ],
            out_specs=pl.BlockSpec((rb, tt), lambda i, j: (i, j)),
            compiler_params=_compiler_params(block_bytes, ("parallel", "parallel")),
        )(x_in, g)

        if w >= out_t:
            env = out[:R, :out_t]
        else:
            env = jnp.pad(out[:R, :], ((0, 0), (0, out_t - w)))   # exactly-zero tail
        return env.reshape(B, C, out_t)

    # ------- fused avg_pool1d(kernel=k, stride=1, padding=k//2, count_include_pad) -------
    p = k // 2
    l_in = out_t + 2 * p                             # zero-padded envelope length
    l_out = out_t + 2 * p - k + 1                    # torch avg_pool1d output length

    rb = None
    for cand in _row_tile_candidates(rp):
        if 2 * 4 * (cand * (l_in + l_out) + l_in) <= (40 << 20):
            rb = cand
            break
    if rb is None:
        # TODO(synk): time-tiled halo variant of the fused pooling for very long signals;
        # fall back to the elementwise kernel plus a k-tap shifted-add epilogue in XLA.
        env = _envelope_following(x, n_fft, hop, None)
        yp = jnp.pad(env, ((0, 0), (0, 0), (p, p)))
        acc = yp[..., 0:l_out]
        for j in range(1, k):
            acc = acc + yp[..., j:j + l_out]
        return acc * (1.0 / k)

    # Zero-padded signal/gain carry the avg_pool's zero padding (env == |0| * 0 there).
    x_in = jnp.pad(xr[:, :out_t], ((0, rp - R), (p, p)))
    g_full = np.zeros((1, l_in), np.float32)
    g_full[0, p:p + out_t] = g_np.astype(np.float32)
    g = jnp.asarray(g_full)

    block_bytes = 4 * (rb * (l_in + l_out) + l_in)
    out = pl.pallas_call(
        functools.partial(_env_kernel, k=k),
        out_shape=jax.ShapeDtypeStruct((rp, l_out), jnp.float32),
        grid=(rp // rb,),
        in_specs=[
            pl.BlockSpec((rb, l_in), lambda i: (i, 0)),
            pl.BlockSpec((1, l_in), lambda i: (0, 0)),
        ],
        out_specs=pl.BlockSpec((rb, l_out), lambda i: (i, 0)),
        compiler_params=_compiler_params(block_bytes, ("parallel",)),
    )(x_in, g)
    return out[:R].reshape(B, C, l_out)


class EnvelopeFollowingLayer:
    """JAX/Pallas port of EnvelopeFollowingLayerTorchScript (no learnable params)."""

    def __init__(self, n_fft=1024, hop_length=512, smoothing_factor=None):
        self.n_fft = int(n_fft)
        self.hop_length = int(hop_length)
        self.smoothing_factor = None if smoothing_factor is None else int(smoothing_factor)

    def __call__(self, x):
        return _envelope_following(x, self.n_fft, self.hop_length, self.smoothing_factor)


# ------------------------------ test-only references ------------------------------
def _reference_envelope(x_np, n_fft, hop):
    """Literal stft -> frame-axis-mask -> istft -> |.| chain in float64 numpy."""
    x_np = np.asarray(x_np, np.float64)
    B, C, T = x_np.shape
    R = B * C
    trim = n_fft // 2
    win = _hann_periodic(n_fft)
    xr = x_np.reshape(R, T)
    xp = np.pad(xr, ((0, 0), (trim, trim)), mode="reflect")
    n_frames = (xp.shape[1] - n_fft) // hop + 1
    frames = np.stack([xp[:, f * hop:f * hop + n_fft] for f in range(n_frames)], axis=1)
    frames = frames * win[None, None, :]
    spec = np.fft.rfft(frames, axis=-1)              # (R, frames, freq)
    spec[:, n_fft // 2 + 1:, :] = 0                  # mask FRAMES, matching the torch code
    tfr = np.fft.irfft(spec, n=n_fft, axis=-1) * win[None, None, :]
    l_full = n_fft + (n_frames - 1) * hop
    y = np.zeros((R, l_full), np.float64)
    env = np.zeros((l_full,), np.float64)
    for f in range(n_frames):
        y[:, f * hop:f * hop + n_fft] += tfr[:, f, :]
        env[f * hop:f * hop + n_fft] += win ** 2
    out_t = (n_frames - 1) * hop
    analytic = y[:, trim:trim + out_t] / env[trim:trim + out_t]
    return np.abs(analytic).reshape(B, C, out_t)


def _avg_pool_ref(env_np, k):
    """F.avg_pool1d(kernel=k, stride=1, padding=k//2, count_include_pad=True) in numpy."""
    p = k // 2
    l_out = env_np.shape[-1] + 2 * p - k + 1
    yp = np.pad(env_np, ((0, 0), (0, 0), (p, p)))
    acc = np.zeros(env_np.shape[:-1] + (l_out,), np.float64)
    for j in range(k):
        acc += yp[..., j:j + l_out]
    return acc / k


if __name__ == "__main__":
    key = jax.random.PRNGKey(0)
    B, C, T = 2, 3, 2048
    x = jax.random.normal(key, (B, C, T), dtype=jnp.float32)
    x_np = np.asarray(x)

    # 1) small n_fft so n_frames (65) exceeds the cutoff (33) and the frame mask bites
    layer = EnvelopeFollowingLayer(n_fft=64, hop_length=32, smoothing_factor=None)
    y = jax.block_until_ready(layer(x))
    ref = _reference_envelope(x_np, 64, 32)
    assert y.shape == ref.shape == (B, C, 2048)
    np.testing.assert_allclose(np.asarray(y), ref, atol=1e-4, rtol=1e-4)

    # 2) fused avg_pool1d smoothing epilogue
    layer_s = EnvelopeFollowingLayer(n_fft=64, hop_length=32, smoothing_factor=5)
    ys = jax.block_until_ready(layer_s(x))
    refs = _avg_pool_ref(ref, 5)
    assert ys.shape == refs.shape
    np.testing.assert_allclose(np.asarray(ys), refs, atol=1e-4, rtol=1e-4)

    # 3) general hop (not a divisor of n_fft//2), lane-unaligned out_t < T
    layer_g = EnvelopeFollowingLayer(n_fft=128, hop_length=40, smoothing_factor=None)
    yg = jax.block_until_ready(layer_g(x))
    refg = _reference_envelope(x_np, 128, 40)
    assert yg.shape == refg.shape == (B, C, 2040)
    np.testing.assert_allclose(np.asarray(yg), refg, atol=1e-4, rtol=1e-4)

    # 4) long signal relative to the cutoff: exercises the exactly-zero-tail skip
    layer_t = EnvelopeFollowingLayer(n_fft=32, hop_length=16, smoothing_factor=None)
    yt = jax.block_until_ready(layer_t(x))
    reft = _reference_envelope(x_np, 32, 16)
    assert yt.shape == reft.shape == (B, C, 2048)
    np.testing.assert_allclose(np.asarray(yt), reft, atol=1e-4, rtol=1e-4)

    print("KERNEL_OK")
</pallas_src>

<mosaic_0001>
module attributes {stable_mosaic.version = 11 : i64} {
  func.func @_env_kernel(%arg0: i32, %arg1: i32, %arg2: memref<8x2048xf32, #tpu.memory_space<vmem>>, %arg3: memref<1x2048xf32, #tpu.memory_space<vmem>>, %arg4: memref<8x2048xf32, #tpu.memory_space<vmem>>) attributes {dimension_semantics = [#tpu.dimension_semantics<parallel>, #tpu.dimension_semantics<parallel>], iteration_bounds = array<i64: 1, 1>, scalar_prefetch = 0 : i64, scratch_operands = 0 : i64, tpu.core_type = #tpu.core_type<tc>, window_params = [{transform_indices = @transform_0, window_bounds = array<i64: 8, 2048>}, {transform_indices = @transform_1, window_bounds = array<i64: 1, 2048>}, {transform_indices = @transform_2, window_bounds = array<i64: 8, 2048>}]} {
    %c0 = arith.constant 0 : index
    %c0_0 = arith.constant 0 : index
    %0 = vector.load %arg2[%c0, %c0_0] : memref<8x2048xf32, #tpu.memory_space<vmem>>, vector<8x2048xf32>
    %1 = math.absf %0 : vector<8x2048xf32>
    %c0_1 = arith.constant 0 : index
    %c0_2 = arith.constant 0 : index
    %2 = vector.load %arg3[%c0_1, %c0_2] : memref<1x2048xf32, #tpu.memory_space<vmem>>, vector<1x2048xf32>
    %3 = vector.broadcast %2 : vector<1x2048xf32> to vector<8x2048xf32>
    %4 = arith.mulf %1, %3 : vector<8x2048xf32>
    %c0_3 = arith.constant 0 : index
    %c0_4 = arith.constant 0 : index
    %5 = vector.load %arg4[%c0_3, %c0_4] : memref<8x2048xf32, #tpu.memory_space<vmem>>, vector<8x2048xf32>
    tpu.vector_store %arg4[%c0_3, %c0_4], %4 {strides = array<i32>} : memref<8x2048xf32, #tpu.memory_space<vmem>>, vector<8x2048xf32>,
    return
  }
  func.func @transform_0(%arg0: i32, %arg1: i32) -> (i32, i32) {
    %c0_i32 = arith.constant 0 : i32
    return %arg0, %arg1 : i32, i32
  }
  func.func @transform_1(%arg0: i32, %arg1: i32) -> (i32, i32) {
    %c0_i32 = arith.constant 0 : i32
    %c0_i32_0 = arith.constant 0 : i32
    return %c0_i32, %arg1 : i32, i32
  }
  func.func @transform_2(%arg0: i32, %arg1: i32) -> (i32, i32) {
    %c0_i32 = arith.constant 0 : i32
    return %arg0, %arg1 : i32, i32
  }
}

</mosaic_0001>

<llo_original>
// kernel: _envelope_following.1
$region0: #{_envelope_following.1}
  #allocation0 [shape = 'u32[]', space=smem, size = 0x4, offset = 0x4, fixed_abs, tag = 'smem constant byte address 0x4 - core index']
  #allocation1 [shape = 'u32[144,128]{1,0:T(1,128)}', space=vmem, size = 0x12000, scoped, tag = 'internal scratch']
  %s0 = inlined_call_operand.vmem [shape: f32[8,2048], index: 0, kind: input, shape index: {}]
  %s1 = inlined_call_operand.vmem [shape: f32[1,2048], index: 1, kind: input, shape index: {}]
  %s2 = inlined_call_operand.vmem [shape: f32[8,2048], index: 2, kind: output, shape index: {}]
  %s3 = sld [smem:[#allocation0]]
  $region18: #{_envelope_following.1} parent=0
    _
  %s5 = ssub.s32 1, %s3
  %s6 = scalar_select 0, %s5, %s3
  // Predicated region
  $region2: #{_envelope_following.1} parent=0 // pred_check
    _
  $region3: #{_envelope_following.1} parent=0 // pred_check_branch
    %8 = sbr.rel (0) target = $region5
  $region4: #{_envelope_following.1} parent=0 // pred_region
    _
  $region5: #{_envelope_following.1} parent=0 // pred_fallthru
    _
  // Predicated region
  $region6: #{_envelope_following.1} parent=0 // pred_check
    _
  $region7: #{_envelope_following.1} parent=0 // pred_check_branch
    %10 = sbr.rel (0) target = $region9
  $region8: #{_envelope_following.1} parent=0 // pred_region
    _
  $region9: #{_envelope_following.1} parent=0 // pred_fallthru
    _
  %v11 = vld [vmem:[%s0] sm:$0xff]
  %v12 = vld [vmem:[%s0 + $0x8] sm:$0xff]
  %v13 = vld [vmem:[%s0 + $0x10] sm:$0xff]
  %v14 = vld [vmem:[%s0 + $0x18] sm:$0xff]
  %v15 = vld [vmem:[%s0 + $0x20] sm:$0xff]
  %v16 = vld [vmem:[%s0 + $0x28] sm:$0xff]
  %v17 = vld [vmem:[%s0 + $0x30] sm:$0xff]
  %v18 = vld [vmem:[%s0 + $0x38] sm:$0xff]
  %v19 = vld [vmem:[%s0 + $0x40] sm:$0xff]
  %v20 = vld [vmem:[%s0 + $0x48] sm:$0xff]
  %v21 = vld [vmem:[%s0 + $0x50] sm:$0xff]
  %v22 = vld [vmem:[%s0 + $0x58] sm:$0xff]
  %v23 = vld [vmem:[%s0 + $0x60] sm:$0xff]
  %v24 = vld [vmem:[%s0 + $0x68] sm:$0xff]
  %v25 = vld [vmem:[%s0 + $0x70] sm:$0xff]
  %v26 = vld [vmem:[%s0 + $0x78] sm:$0xff]
  %v27 = vand.u32 2147483647, %v11
  %v28 = vand.u32 2147483647, %v12
  %v29 = vand.u32 2147483647, %v13
  %v30 = vand.u32 2147483647, %v14
  %v31 = vand.u32 2147483647, %v15
  %v32 = vand.u32 2147483647, %v16
  %v33 = vand.u32 2147483647, %v17
  %v34 = vand.u32 2147483647, %v18
  %v35 = vand.u32 2147483647, %v19
  %v36 = vand.u32 2147483647, %v20
  %v37 = vand.u32 2147483647, %v21
  %v38 = vand.u32 2147483647, %v22
  %v39 = vand.u32 2147483647, %v23
  %v40 = vand.u32 2147483647, %v24
  %v41 = vand.u32 2147483647, %v25
  %v42 = vand.u32 2147483647, %v26
  %v43 = vld [vmem:[%s1] sm:$0xff]
  %v44 = vld [vmem:[%s1 + $0x8] sm:$0xff]
  %v47 = vlaneseq
  %v48 = vshrl.u32 %v47, 7
  %v49 = vsub.s32 0, %v48
  %v50 = vrot.slane %v43, %v49
  %v51 = vlaneseq
  %v52 = vshrl.u32 %v51, 7
  %v53 = vsub.s32 1, %v52
  %v54 = vrot.slane %v43, %v53
  %v55 = vlaneseq
  %v56 = vshrl.u32 %v55, 7
  %v57 = vsub.s32 2, %v56
  %v58 = vrot.slane %v43, %v57
  %v59 = vlaneseq
  %v60 = vshrl.u32 %v59, 7
  %v61 = vsub.s32 3, %v60
  %v62 = vrot.slane %v43, %v61
  %v63 = vlaneseq
  %v64 = vshrl.u32 %v63, 7
  %v65 = vsub.s32 4, %v64
  %v66 = vrot.slane %v43, %v65
  %v67 = vlaneseq
  %v68 = vshrl.u32 %v67, 7
  %v69 = vsub.s32 5, %v68
  %v70 = vrot.slane %v43, %v69
  %v71 = vlaneseq
  %v72 = vshrl.u32 %v71, 7
  %v73 = vsub.s32 6, %v72
  %v74 = vrot.slane %v43, %v73
  %v75 = vlaneseq
  %v76 = vshrl.u32 %v75, 7
  %v77 = vsub.s32 7, %v76
  %v78 = vrot.slane %v43, %v77
  %v79 = vlaneseq
  %v80 = vshrl.u32 %v79, 7
  %v81 = vsub.s32 0, %v80
  %v82 = vrot.slane %v44, %v81
  %v83 = vlaneseq
  %v84 = vshrl.u32 %v83, 7
  %v85 = vsub.s32 1, %v84
  %v86 = vrot.slane %v44, %v85
  %v87 = vlaneseq
  %v88 = vshrl.u32 %v87, 7
  %v89 = vsub.s32 2, %v88
  %v90 = vrot.slane %v44, %v89
  %v91 = vlaneseq
  %v92 = vshrl.u32 %v91, 7
  %v93 = vsub.s32 3, %v92
  %v94 = vrot.slane %v44, %v93
  %v95 = vlaneseq
  %v96 = vshrl.u32 %v95, 7
  %v97 = vsub.s32 4, %v96
  %v98 = vrot.slane %v44, %v97
  %v99 = vlaneseq
  %v100 = vshrl.u32 %v99, 7
  %v101 = vsub.s32 5, %v100
  %v102 = vrot.slane %v44, %v101
  %v103 = vlaneseq
  %v104 = vshrl.u32 %v103, 7
  %v105 = vsub.s32 6, %v104
  %v106 = vrot.slane %v44, %v105
  %v107 = vlaneseq
  %v108 = vshrl.u32 %v107, 7
  %v109 = vsub.s32 7, %v108
  %v110 = vrot.slane %v44, %v109
  %v127 = vmul.f32 %v27, %v50
  %v128 = vmul.f32 %v28, %v54
  %v129 = vmul.f32 %v29, %v58
  %v130 = vmul.f32 %v30, %v62
  %v131 = vmul.f32 %v31, %v66
  %v132 = vmul.f32 %v32, %v70
  %v133 = vmul.f32 %v33, %v74
  %v134 = vmul.f32 %v34, %v78
  %v135 = vmul.f32 %v35, %v82
  %v136 = vmul.f32 %v36, %v86
  %v137 = vmul.f32 %v37, %v90
  %v138 = vmul.f32 %v38, %v94
  %v139 = vmul.f32 %v39, %v98
  %v140 = vmul.f32 %v40, %v102
  %v141 = vmul.f32 %v41, %v106
  %v142 = vmul.f32 %v42, %v110
  %143 = vst [vmem:[%s2] sm:$0xff] %v127
  %144 = vst [vmem:[%s2 + $0x8] sm:$0xff] %v128
  %145 = vst [vmem:[%s2 + $0x10] sm:$0xff] %v129
  %146 = vst [vmem:[%s2 + $0x18] sm:$0xff] %v130
  %147 = vst [vmem:[%s2 + $0x20] sm:$0xff] %v131
  %148 = vst [vmem:[%s2 + $0x28] sm:$0xff] %v132
  %149 = vst [vmem:[%s2 + $0x30] sm:$0xff] %v133
  %150 = vst [vmem:[%s2 + $0x38] sm:$0xff] %v134
  %151 = vst [vmem:[%s2 + $0x40] sm:$0xff] %v135
  %152 = vst [vmem:[%s2 + $0x48] sm:$0xff] %v136
  %153 = vst [vmem:[%s2 + $0x50] sm:$0xff] %v137
  %154 = vst [vmem:[%s2 + $0x58] sm:$0xff] %v138
  %155 = vst [vmem:[%s2 + $0x60] sm:$0xff] %v139
  %156 = vst [vmem:[%s2 + $0x68] sm:$0xff] %v140
  %157 = vst [vmem:[%s2 + $0x70] sm:$0xff] %v141
  %158 = vst [vmem:[%s2 + $0x78] sm:$0xff] %v142
  // Predicated region
  $region10: #{_envelope_following.1} parent=0 // pred_check
    _
  $region11: #{_envelope_following.1} parent=0 // pred_check_branch
    %160 = sbr.rel (0) target = $region13
  $region12: #{_envelope_following.1} parent=0 // pred_region
    _
  $region13: #{_envelope_following.1} parent=0 // pred_fallthru
    _
  // Predicated region
  $region14: #{_envelope_following.1} parent=0 // pred_check
    _
  $region15: #{_envelope_following.1} parent=0 // pred_check_branch
    %162 = sbr.rel (0) target = $region17
  $region16: #{_envelope_following.1} parent=0 // pred_region
    _
  $region17: #{_envelope_following.1} parent=0 // pred_fallthru
    _

</llo_original>
